<compile_context>
chip_gen: v6e
topology: v6e:2x2x1
jax: 0.10.0
libtpu: 0.0.40
codegen_flags: <defaults>
</compile_context>

<pallas_src>
import numpy as np

import jax
import jax.numpy as jnp
from jax import lax
from jax.experimental import pallas as pl
from jax.experimental.pallas import tpu as pltpu


def _round_up(x, m):
    return ((x + m - 1) // m) * m


def _pick_row_tile(h_pad, w_pad, batch, target_m=512):
    """Row-tile height: a multiple of 8 that divides h_pad, with M = TH*w_pad
    near target_m; keeps >= 2 total parallel grid steps when the shape allows
    (so both v7x TensorCores get work even at batch 1)."""
    cands = [t for t in range(8, h_pad + 1, 8) if h_pad % t == 0]
    if batch == 1:
        two_step = [t for t in cands if h_pad // t >= 2]
        if two_step:
            cands = two_step
    fitting = [t for t in cands if t * w_pad <= target_m]
    return max(fitting) if fitting else min(cands)


def _matmul_bias_kernel(x_ref, w_ref, b_ref, o_ref):
    # x_ref: (1, M, K_PAD)    bf16 lane-dense im2col row tile
    # w_ref: (K_PAD, OC_PAD)  bf16 folded (tap, channel) -> class weights
    # b_ref: (1, OC_PAD)      f32  summed biases (lane padded with zeros)
    # o_ref: (1, M, OC_PAD)   output row tile
    acc = jnp.dot(x_ref[0], w_ref[...], preferred_element_type=jnp.float32)
    o_ref[0] = (acc + b_ref[...]).astype(o_ref.dtype)


def classifier_module_forward(x_nchw, weights, biases, dilations,
                              out_dtype=jnp.float32):
    """Forward pass of Classifier_Module (sum of 3x3 dilated convs, with bias).

    x_nchw   : (N, C, H, W) float32           -- PyTorch NCHW convention
    weights  : (B, OC, C, 3, 3) float32       -- PyTorch OIHW, one per branch
    biases   : (B, OC) float32
    dilations: tuple of python ints (padding == dilation for every branch)
    returns  : (N, OC, H, W) out_dtype
    """
    N, C, H, W = x_nchw.shape
    num_branches, OC = biases.shape
    assert weights.shape == (num_branches, OC, C, 3, 3)
    dilations = tuple(int(d) for d in dilations)
    assert len(dilations) == num_branches
    dmax = max(dilations)

    # ---- alignment / tiling choices --------------------------------------
    OC_PAD = _round_up(OC, 128)       # lane-dense output stores (unmasked vst)
    H_pad = _round_up(H, 8)           # keep reshapes / row tiles (8,128)-aligned
    W_pad = _round_up(W, 8)
    TH = _pick_row_tile(H_pad, W_pad, N)
    n_ht = H_pad // TH
    M = TH * W_pad                    # rows per MXU matmul (>= 256 when H allows)

    # ---- layout conversion + im2col hoisted to XLA (lane-dense slab) ------
    x_nhwc = jnp.transpose(x_nchw, (0, 2, 3, 1)).astype(jnp.bfloat16)
    # dmax halo on every side plus the 8-alignment tail (all zeros, exact
    # w.r.t. the conv's own zero padding since padding == dilation <= dmax).
    x_halo = jnp.pad(
        x_nhwc,
        ((0, 0), (dmax, dmax + (H_pad - H)), (dmax, dmax + (W_pad - W)), (0, 0)))

    # One tap per (branch, kh, kw); slab columns and weight rows share order.
    w_hwio = jnp.transpose(weights, (0, 3, 4, 2, 1))       # (B, 3, 3, C, OC)
    tap_offsets = []
    w_blocks = []
    for b, d in enumerate(dilations):
        for kh in range(3):
            for kw in range(3):
                tap_offsets.append((dmax + (kh - 1) * d, dmax + (kw - 1) * d))
                w_blocks.append(w_hwio[b, kh, kw])          # (C, OC)

    KTOT = len(tap_offsets) * C
    K_PAD = _round_up(KTOT, 128)      # fill the MXU contraction dim (zero pad)

    slab = jnp.concatenate(
        [x_halo[:, h0:h0 + H_pad, w0:w0 + W_pad, :] for (h0, w0) in tap_offsets],
        axis=-1)                                            # (N, H_pad, W_pad, KTOT)
    slab = jnp.pad(slab, ((0, 0), (0, 0), (0, 0), (0, K_PAD - KTOT)))
    slab = slab.reshape(N, H_pad * W_pad, K_PAD)            # lane-dense row tiles

    w_folded = jnp.concatenate(w_blocks, axis=0)            # (KTOT, OC) f32
    w_folded = jnp.pad(w_folded, ((0, K_PAD - KTOT), (0, OC_PAD - OC)))
    w_folded = w_folded.astype(jnp.bfloat16)                # bf16 operand, f32 acc

    # Bias of the sum of convs is the sum of the biases (kept f32).
    b_sum = jnp.sum(biases, axis=0, keepdims=True).astype(jnp.float32)
    b_sum = jnp.pad(b_sum, ((0, 0), (0, OC_PAD - OC)))      # (1, OC_PAD)

    # ---- grid: both axes parallel; larger axis first (v7x dual TC) --------
    if n_ht > N:
        grid = (n_ht, N)
        tile_map = lambda h, n: (n, h, 0)
    else:
        grid = (N, n_ht)
        tile_map = lambda n, h: (n, h, 0)
    const_map = lambda i, j: (0, 0)

    # Explicit scoped-VMEM budget: pipelined blocks plus generous headroom.
    out_itemsize = np.dtype(out_dtype).itemsize
    vmem_needed = (2 * M * K_PAD * 2                 # double-buffered slab tiles
                   + 2 * M * OC_PAD * out_itemsize   # double-buffered out tiles
                   + 2 * K_PAD * OC_PAD * 2          # weights (worst case 2 bufs)
                   + 2 * 8 * OC_PAD * 4)             # bias
    vmem_limit = int(min(max(2 * vmem_needed, 8 << 20), 64 << 20))

    def build(single_buffer_invariants):
        if single_buffer_invariants:
            # Grid-invariant operands (constant index_map -> one DMA); single
            # buffering halves their resident VMEM.
            w_spec = pl.BlockSpec((K_PAD, OC_PAD), const_map,
                                  pipeline_mode=pl.Buffered(1))
            b_spec = pl.BlockSpec((1, OC_PAD), const_map,
                                  pipeline_mode=pl.Buffered(1))
        else:
            w_spec = pl.BlockSpec((K_PAD, OC_PAD), const_map)
            b_spec = pl.BlockSpec((1, OC_PAD), const_map)
        return pl.pallas_call(
            _matmul_bias_kernel,
            out_shape=jax.ShapeDtypeStruct((N, H_pad * W_pad, OC_PAD), out_dtype),
            grid_spec=pltpu.PrefetchScalarGridSpec(
                num_scalar_prefetch=0,
                grid=grid,
                in_specs=[pl.BlockSpec((1, M, K_PAD), tile_map), w_spec, b_spec],
                out_specs=pl.BlockSpec((1, M, OC_PAD), tile_map),
            ),
            compiler_params=pltpu.CompilerParams(
                dimension_semantics=("parallel", "parallel"),
                vmem_limit_bytes=vmem_limit),
        )

    try:
        out_flat = build(True)(slab, w_folded, b_sum)
    except Exception:
        # Fallback for jax versions that reject single-buffered pipeline_mode;
        # identical math, just default (double) buffering of the invariants.
        out_flat = build(False)(slab, w_folded, b_sum)

    # TODO(synk): fuse this slice/NCHW transpose (and a bf16 out_dtype) into
    # the consumer to avoid an extra HBM round trip over the lane-padded output.
    out = out_flat.reshape(N, H_pad, W_pad, OC_PAD)[:, :H, :W, :OC]
    return jnp.transpose(out, (0, 3, 1, 2))


def _reference_forward(x_nchw, weights, biases, dilations):
    """Pure-JAX reference (lax.conv_general_dilated) for correctness check."""
    x_nhwc = jnp.transpose(x_nchw, (0, 2, 3, 1))
    out = None
    for bi, d in enumerate(dilations):
        w_hwio = jnp.transpose(weights[bi], (2, 3, 1, 0))   # OIHW -> HWIO
        y = lax.conv_general_dilated(
            x_nhwc, w_hwio,
            window_strides=(1, 1),
            padding=[(d, d), (d, d)],
            rhs_dilation=(d, d),
            dimension_numbers=("NHWC", "HWIO", "NHWC"),
        ) + biases[bi][None, None, None, :]
        out = y if out is None else out + y
    return jnp.transpose(out, (0, 3, 1, 2))


if __name__ == "__main__":
    # Small shapes consistent with the module:
    #   inplanes=4, num_classes=8, dilation_series=padding_series=[1, 2, 3]
    N, C, H, W = 2, 4, 16, 16
    OC = 8
    dilations = (1, 2, 3)
    num_branches = len(dilations)

    key = jax.random.PRNGKey(0)
    kx, kw, kb = jax.random.split(key, 3)

    x = jax.random.normal(kx, (N, C, H, W), dtype=jnp.float32)
    # Module __init__: weight ~ Normal(0, 0.01); bias at Conv2d default scale.
    weights = 0.01 * jax.random.normal(kw, (num_branches, OC, C, 3, 3),
                                       dtype=jnp.float32)
    bound = 1.0 / jnp.sqrt(C * 3 * 3)
    biases = jax.random.uniform(kb, (num_branches, OC), dtype=jnp.float32,
                                minval=-bound, maxval=bound)

    out = jax.block_until_ready(
        classifier_module_forward(x, weights, biases, dilations))

    # Reference computed on the same bf16-rounded operands (the kernel uses
    # bf16 inputs/weights with f32 accumulation -- a deliberate precision trade).
    x_r = x.astype(jnp.bfloat16).astype(jnp.float32)
    w_r = weights.astype(jnp.bfloat16).astype(jnp.float32)
    ref = jax.block_until_ready(_reference_forward(x_r, w_r, biases, dilations))

    assert out.shape == (N, OC, H, W)
    assert jnp.allclose(out, ref, atol=1e-3, rtol=1e-3), "mismatch vs reference"

    print("KERNEL_OK")
</pallas_src>

<mosaic_0001>
module attributes {stable_mosaic.version = 11 : i64} {
  func.func @_matmul_bias_kernel(%arg0: i32, %arg1: i32, %arg2: memref<1x256x128xbf16, #tpu.memory_space<vmem>>, %arg3: memref<128x128xbf16, #tpu.memory_space<vmem>>, %arg4: memref<1x128xf32, #tpu.memory_space<vmem>>, %arg5: memref<1x256x128xf32, #tpu.memory_space<vmem>>) attributes {dimension_semantics = [#tpu.dimension_semantics<parallel>, #tpu.dimension_semantics<parallel>], iteration_bounds = array<i64: 2, 1>, scalar_prefetch = 0 : i64, scratch_operands = 0 : i64, tpu.core_type = #tpu.core_type<tc>, window_params = [{transform_indices = @transform_0, window_bounds = array<i64: 1, 256, 128>}, {pipeline_mode = #tpu.pipeline_mode<synchronous>, transform_indices = @transform_1, window_bounds = array<i64: 128, 128>}, {pipeline_mode = #tpu.pipeline_mode<synchronous>, transform_indices = @transform_2, window_bounds = array<i64: 1, 128>}, {transform_indices = @transform_3, window_bounds = array<i64: 1, 256, 128>}]} {
    %c0 = arith.constant 0 : index
    %c0_0 = arith.constant 0 : index
    %c0_1 = arith.constant 0 : index
    %0 = vector.load %arg2[%c0, %c0_0, %c0_1] : memref<1x256x128xbf16, #tpu.memory_space<vmem>>, vector<1x256x128xbf16>
    %1 = vector.shape_cast %0 : vector<1x256x128xbf16> to vector<256x128xbf16>
    %c0_2 = arith.constant 0 : index
    %c0_3 = arith.constant 0 : index
    %2 = vector.load %arg3[%c0_2, %c0_3] : memref<128x128xbf16, #tpu.memory_space<vmem>>, vector<128x128xbf16>
    %cst = arith.constant dense<0.000000e+00> : vector<256x128xf32>
    %3 = tpu.matmul %1, %2, %cst {dimension_numbers = #tpu.dot_dimension_numbers<[1], [0], [0], [1], [0, 0, 1, 1], [], []>} : vector<256x128xbf16>, vector<128x128xbf16>, vector<256x128xf32> -> vector<256x128xf32>
    %c0_4 = arith.constant 0 : index
    %c0_5 = arith.constant 0 : index
    %4 = vector.load %arg4[%c0_4, %c0_5] : memref<1x128xf32, #tpu.memory_space<vmem>>, vector<1x128xf32>
    %5 = vector.broadcast %4 : vector<1x128xf32> to vector<256x128xf32>
    %6 = arith.addf %3, %5 : vector<256x128xf32>
    %c0_6 = arith.constant 0 : index
    %c0_7 = arith.constant 0 : index
    %c0_8 = arith.constant 0 : index
    %7 = vector.load %arg5[%c0_6, %c0_7, %c0_8] : memref<1x256x128xf32, #tpu.memory_space<vmem>>, vector<1x256x128xf32>
    %8 = vector.shape_cast %7 : vector<1x256x128xf32> to vector<256x128xf32>
    %9 = vector.shape_cast %6 : vector<256x128xf32> to vector<1x256x128xf32>
    tpu.vector_store %arg5[%c0_6, %c0_7, %c0_8], %9 {strides = array<i32>} : memref<1x256x128xf32, #tpu.memory_space<vmem>>, vector<1x256x128xf32>,
    return
  }
  func.func @transform_0(%arg0: i32, %arg1: i32) -> (i32, i32, i32) {
    %c0_i32 = arith.constant 0 : i32
    %c0_i32_0 = arith.constant 0 : i32
    return %arg0, %arg1, %c0_i32 : i32, i32, i32
  }
  func.func @transform_1(%arg0: i32, %arg1: i32) -> (i32, i32) {
    %c0_i32 = arith.constant 0 : i32
    %c0_i32_0 = arith.constant 0 : i32
    %c0_i32_1 = arith.constant 0 : i32
    return %c0_i32, %c0_i32_0 : i32, i32
  }
  func.func @transform_2(%arg0: i32, %arg1: i32) -> (i32, i32) {
    %c0_i32 = arith.constant 0 : i32
    %c0_i32_0 = arith.constant 0 : i32
    %c0_i32_1 = arith.constant 0 : i32
    return %c0_i32, %c0_i32_0 : i32, i32
  }
  func.func @transform_3(%arg0: i32, %arg1: i32) -> (i32, i32, i32) {
    %c0_i32 = arith.constant 0 : i32
    %c0_i32_0 = arith.constant 0 : i32
    return %arg0, %arg1, %c0_i32 : i32, i32, i32
  }
}

module attributes {stable_mosaic.version = 11 : i64} {
  func.func @_matmul_bias_kernel(%arg0: i32, %arg1: i32, %arg2: memref<1x256x128xbf16, #tpu.memory_space<vmem>>, %arg3: memref<128x128xbf16, #tpu.memory_space<vmem>>, %arg4: memref<1x128xf32, #tpu.memory_space<vmem>>, %arg5: memref<1x256x128xf32, #tpu.memory_space<vmem>>) attributes {dimension_semantics = [#tpu.dimension_semantics<parallel>, #tpu.dimension_semantics<parallel>], iteration_bounds = array<i64: 2, 1>, scalar_prefetch = 0 : i64, scratch_operands = 0 : i64, tpu.core_type = #tpu.core_type<tc>, window_params = [{transform_indices = @transform_0, window_bounds = array<i64: 1, 256, 128>}, {pipeline_mode = #tpu.pipeline_mode<synchronous>, transform_indices = @transform_1, window_bounds = array<i64: 128, 128>}, {pipeline_mode = #tpu.pipeline_mode<synchronous>, transform_indices = @transform_2, window_bounds = array<i64: 1, 128>}, {transform_indices = @transform_3, window_bounds = array<i64: 1, 256, 128>}]} {
    %c0 = arith.constant 0 : index
    %c0_0 = arith.constant 0 : index
    %c0_1 = arith.constant 0 : index
    %0 = vector.load %arg2[%c0, %c0_0, %c0_1] : memref<1x256x128xbf16, #tpu.memory_space<vmem>>, vector<1x256x128xbf16>
    %1 = vector.shape_cast %0 : vector<1x256x128xbf16> to vector<256x128xbf16>
    %c0_2 = arith.constant 0 : index
    %c0_3 = arith.constant 0 : index
    %2 = vector.load %arg3[%c0_2, %c0_3] : memref<128x128xbf16, #tpu.memory_space<vmem>>, vector<128x128xbf16>
    %cst = arith.constant dense<0.000000e+00> : vector<256x128xf32>
    %3 = tpu.matmul %1, %2, %cst {dimension_numbers = #tpu.dot_dimension_numbers<[1], [0], [0], [1], [0, 0, 1, 1], [], []>} : vector<256x128xbf16>, vector<128x128xbf16>, vector<256x128xf32> -> vector<256x128xf32>
    %c0_4 = arith.constant 0 : index
    %c0_5 = arith.constant 0 : index
    %4 = vector.load %arg4[%c0_4, %c0_5] : memref<1x128xf32, #tpu.memory_space<vmem>>, vector<1x128xf32>
    %5 = vector.broadcast %4 : vector<1x128xf32> to vector<256x128xf32>
    %6 = arith.addf %3, %5 : vector<256x128xf32>
    %c0_6 = arith.constant 0 : index
    %c0_7 = arith.constant 0 : index
    %c0_8 = arith.constant 0 : index
    %7 = vector.load %arg5[%c0_6, %c0_7, %c0_8] : memref<1x256x128xf32, #tpu.memory_space<vmem>>, vector<1x256x128xf32>
    %8 = vector.shape_cast %7 : vector<1x256x128xf32> to vector<256x128xf32>
    %9 = vector.shape_cast %6 : vector<256x128xf32> to vector<1x256x128xf32>
    tpu.vector_store %arg5[%c0_6, %c0_7, %c0_8], %9 {strides = array<i32>} : memref<1x256x128xf32, #tpu.memory_space<vmem>>, vector<1x256x128xf32>,
    return
  }
  func.func @transform_0(%arg0: i32, %arg1: i32) -> (i32, i32, i32) {
    %c0_i32 = arith.constant 0 : i32
    %c0_i32_0 = arith.constant 0 : i32
    return %arg0, %arg1, %c0_i32 : i32, i32, i32
  }
  func.func @transform_1(%arg0: i32, %arg1: i32) -> (i32, i32) {
    %c0_i32 = arith.constant 0 : i32
    %c0_i32_0 = arith.constant 0 : i32
    %c0_i32_1 = arith.constant 0 : i32
    return %c0_i32, %c0_i32_0 : i32, i32
  }
  func.func @transform_2(%arg0: i32, %arg1: i32) -> (i32, i32) {
    %c0_i32 = arith.constant 0 : i32
    %c0_i32_0 = arith.constant 0 : i32
    %c0_i32_1 = arith.constant 0 : i32
    return %c0_i32, %c0_i32_0 : i32, i32
  }
  func.func @transform_3(%arg0: i32, %arg1: i32) -> (i32, i32, i32) {
    %c0_i32 = arith.constant 0 : i32
    %c0_i32_0 = arith.constant 0 : i32
    return %arg0, %arg1, %c0_i32 : i32, i32, i32
  }
}

</mosaic_0001>

<llo_original>
// kernel: tpu_custom_call.1
$region0: #{tpu_custom_call.1}
  #allocation0 [shape = 'u32[]', space=smem, size = 0x4, offset = 0x4, fixed_abs, tag = 'smem constant byte address 0x4 - core index']
  #allocation1 [shape = 'u32[144,128]{1,0:T(1,128)}', space=vmem, size = 0x12000, scoped, tag = 'internal scratch']
  %s0 = inlined_call_operand.hbm [shape: bf16[2,256,128], index: 0, kind: input, shape index: {}]
  %s1 = inlined_call_operand.hbm [shape: bf16[128,128], index: 1, kind: input, shape index: {}]
  %s2 = inlined_call_operand.vmem [shape: f32[1,128], index: 2, kind: input, shape index: {}]
  %s3 = inlined_call_operand.hbm [shape: f32[2,256,128], index: 3, kind: output, shape index: {}]
  %s4 = sld [smem:[#allocation0]]
  $region53: #{tpu_custom_call.1} parent=0
    _
  %s6 = ssub.s32 1, %s4
  %s7 = scalar_select 0, %s6, %s4
  $region1: #{tpu_custom_call.1} parent=0
    #allocation2 [shape = 'u8[131072]{0}', space=vmem, size = 0x20000, scoped, tag = 'input window, operand 0']
    #allocation3 [shape = 's32[2]{0}', space=sflag, size = 0x8, scoped, tag = 'scoped memory for tpu_custom_call.1']
    #allocation4 [shape = 's32[2]{0}', space=sflag, size = 0x8, scoped, tag = 'scoped memory for tpu_custom_call.1']
    #allocation5 [shape = 'u8[32768]{0}', space=vmem, size = 0x8000, scoped, tag = 'input window, operand 1, single buffered']
    #allocation6 [shape = 's32[1]{0}', space=sflag, size = 0x4, scoped, tag = 'scoped memory for tpu_custom_call.1']
    #allocation7 [shape = 'u8[262144]{0}', space=vmem, size = 0x40000, scoped, tag = 'output window, operand 0']
    %8 = vsyncpa [#allocation3], 0
    %s9 = scalar_lea.sflag [#allocation3], 1
    %10 = vsyncpa %s9, 0
    %11 = vsyncpa [#allocation6], 0
    %12 = vsyncpa [#allocation4], 0
    %s13 = scalar_lea.sflag [#allocation4], 1
    %14 = vsyncpa %s13, 0
    loop: start=0, step=1, limit=4
    $region2: #{tpu_custom_call.1} parent=1 // loop_pre_header
      _
    $region3: #{tpu_custom_call.1} parent=1 // loop_header
      %s16 = sphi 0, %s20
      %p17 = scmp.ge.s32.totalorder %s16, 4
      %s23 = sphi 0, %s35
      %s24 = sphi 0, %s31
      %s25 = sphi 0, %s23
      %s26 = sphi 0, %s24
      %s27 = sphi 0, %s25
      %s28 = sphi 0, %s26
      %s40 = sphi 0, %s42
      %s43 = sphi 0, %s40
      %s44 = sphi 0, %s43
      %s60 = sphi 0, %s44
      %s64 = sphi 0, %s64
      %s66 = sphi 0, %s64
      %s67 = sphi 0, %s66
      %s81 = sphi 0, %s67
      %s85 = sphi 0, %s85
      %s87 = sphi 0, %s85
      %s88 = sphi 0, %s87
      %s102 = sphi 0, %s88
      %s110 = sphi 0, %s112
      %s113 = sphi 0, %s110
      %s114 = sphi 0, %s113
      %s130 = sphi 0, %s114
    $region4: #{tpu_custom_call.1} parent=1 // loop_header_branch
      %19 = sbr.rel (%p17) target = $region8
    $region5: #{tpu_custom_call.1} parent=1 // loop_body
      %s21 = ssub.s32 %s16, 1
      %s22 = ssub.s32 %s16, 2
      %s29 = sadd.s32 1, %s24
      %p30 = scmp.ge.s32.totalorder %s29, 1
      %s31 = scalar_select %p30, 0, %s29
      %s32 = sadd.s32 1, %s23
      %s33 = scalar_select %p30, %s32, %s23
      %p34 = scmp.ge.s32.totalorder %s33, 2
      %s35 = scalar_select %p34, 0, %s33
      %s36 = ssub.s32 %s23, %s35
      %s37 = ssub.s32 %s24, %s31
      %s38 = sor.u32 %s36, %s37
      %p39 = scmp.eq.s32.totalorder %s38, 0
      %s41 = sadd.s32 %s40, 1
      %s42 = scalar_select %p39, %s40, %s41
      %p45 = pneg %p39
      %p46 = scmp.eq.s32.totalorder %s16, 1
      %p47 = por %p45, %p46
      %p48 = scmp.ne.s32.totalorder %s40, %s43
      %p49 = scmp.eq.s32.totalorder %s16, 0
      %p50 = por %p48, %p49
      %p51 = scmp.ne.s32.totalorder %s40, %s43
      %p52 = scmp.eq.s32.totalorder %s21, 1
      %p53 = por %p51, %p52
      %p54 = scmp.ne.s32.totalorder %s43, %s44
      %p55 = scmp.eq.s32.totalorder %s21, 0
      %p56 = por %p54, %p55
      %p57 = scmp.ne.s32.totalorder %s43, %s44
      %p58 = scmp.eq.s32.totalorder %s22, 1
      %p59 = por %p57, %p58
      %p61 = scmp.ne.s32.totalorder %s44, %s60
      %p62 = scmp.eq.s32.totalorder %s22, 0
      %p63 = por %p61, %p62
      %s65 = sadd.s32 %s64, 1
      %p68 = scmp.eq.s32.totalorder %s16, 1
      %p69 = scmp.ne.s32.totalorder %s64, %s66
      %p70 = scmp.eq.s32.totalorder %s16, 0
      %p71 = por %p69, %p70
      %p72 = scmp.ne.s32.totalorder %s64, %s66
      %p73 = scmp.eq.s32.totalorder %s21, 1
      %p74 = por %p72, %p73
      %p75 = scmp.ne.s32.totalorder %s66, %s67
      %p76 = scmp.eq.s32.totalorder %s21, 0
      %p77 = por %p75, %p76
      %p78 = scmp.ne.s32.totalorder %s66, %s67
      %p79 = scmp.eq.s32.totalorder %s22, 1
      %p80 = por %p78, %p79
      %p82 = scmp.ne.s32.totalorder %s67, %s81
      %p83 = scmp.eq.s32.totalorder %s22, 0
      %p84 = por %p82, %p83
      %s86 = sadd.s32 %s85, 1
      %p89 = scmp.eq.s32.totalorder %s16, 1
      %p90 = scmp.ne.s32.totalorder %s85, %s87
      %p91 = scmp.eq.s32.totalorder %s16, 0
      %p92 = por %p90, %p91
      %p93 = scmp.ne.s32.totalorder %s85, %s87
      %p94 = scmp.eq.s32.totalorder %s21, 1
      %p95 = por %p93, %p94
      %p96 = scmp.ne.s32.totalorder %s87, %s88
      %p97 = scmp.eq.s32.totalorder %s21, 0
      %p98 = por %p96, %p97
      %p99 = scmp.ne.s32.totalorder %s87, %s88
      %p100 = scmp.eq.s32.totalorder %s22, 1
      %p101 = por %p99, %p100
      %p103 = scmp.ne.s32.totalorder %s88, %s102
      %p104 = scmp.eq.s32.totalorder %s22, 0
      %p105 = por %p103, %p104
      %s106 = ssub.s32 %s23, %s35
      %s107 = ssub.s32 %s24, %s31
      %s108 = sor.u32 %s106, %s107
      %p109 = scmp.eq.s32.totalorder %s108, 0
      %s111 = sadd.s32 %s110, 1
      %s112 = scalar_select %p109, %s110, %s111
      %p115 = pneg %p109
      %p116 = scmp.eq.s32.totalorder %s16, 1
      %p117 = por %p115, %p116
      %p118 = scmp.ne.s32.totalorder %s110, %s113
      %p119 = scmp.eq.s32.totalorder %s16, 0
      %p120 = por %p118, %p119
      %p121 = scmp.ne.s32.totalorder %s110, %s113
      %p122 = scmp.eq.s32.totalorder %s21, 1
      %p123 = por %p121, %p122
      %p124 = scmp.ne.s32.totalorder %s113, %s114
      %p125 = scmp.eq.s32.totalorder %s21, 0
      %p126 = por %p124, %p125
      %p127 = scmp.ne.s32.totalorder %s113, %s114
      %p128 = scmp.eq.s32.totalorder %s22, 1
      %p129 = por %p127, %p128
      %p131 = scmp.ne.s32.totalorder %s114, %s130
      %p132 = scmp.eq.s32.totalorder %s22, 0
      %p133 = por %p131, %p132
      %p134 = scmp.le.s32.totalorder 1, %s16
      %p135 = scmp.lt.s32.totalorder %s16, 3
      %p136 = pnand %p134, %p135
      %p137 = pneg %p136
      // Predicated region
      $region9: #{tpu_custom_call.1} parent=5 // pred_check
        _
      $region10: #{tpu_custom_call.1} parent=5 // pred_check_branch
        %139 = sbr.rel (%p136) target = $region12
      $region11: #{tpu_custom_call.1} parent=5 // pred_region
        %s140 = ssub.s32 %s16, 1
        // Predicated region
        $region13: #{tpu_custom_call.1} parent=11 // pred_check
          %p141 = pneg %p77
        $region14: #{tpu_custom_call.1} parent=11 // pred_check_branch
          %143 = sbr.rel (%p141) target = $region16
        $region15: #{tpu_custom_call.1} parent=11 // pred_region
          %s145 = ssub.s32 1024, 1024
          %146 = vsyncadd [#allocation6], %s145
          %s147 = sshll.u32 [#allocation5], 4
          %s148 = int_to_ptr.vmem [resolvable:$true] %s147
          %153 = dma.hbm_to_vmem [thread:$0]  %s1, 1024, %s148, [#allocation6], 64, 64, 4
        $region16: #{tpu_custom_call.1} parent=11 // pred_fallthru
          _
        // Predicated region
        $region17: #{tpu_custom_call.1} parent=11 // pred_check
          %p154 = pneg %p98
        $region18: #{tpu_custom_call.1} parent=11 // pred_check_branch
          %156 = sbr.rel (%p154) target = $region20
        $region19: #{tpu_custom_call.1} parent=11 // pred_region
          _
        $region20: #{tpu_custom_call.1} parent=11 // pred_fallthru
          _
      $region12: #{tpu_custom_call.1} parent=5 // pred_fallthru
        _
      %p157 = scmp.lt.s32.totalorder %s16, 2
      // Predicated region
      $region21: #{tpu_custom_call.1} parent=5 // pred_check
        %p158 = pneg %p157
      $region22: #{tpu_custom_call.1} parent=5 // pred_check_branch
        %160 = sbr.rel (%p158) target = $region24
      $region23: #{tpu_custom_call.1} parent=5 // pred_region
        // Predicated region
        $region25: #{tpu_custom_call.1} parent=23 // pred_check
          %p161 = pneg %p50
        $region26: #{tpu_custom_call.1} parent=23 // pred_check_branch
          %163 = sbr.rel (%p161) target = $region28
        $region27: #{tpu_custom_call.1} parent=23 // pred_region
          %s164 = sand.u32 %s40, 1
          %s165 = scalar_lea.sflag [#allocation3], %s164
          %s166 = sand.u32 %s40, 1
          %s167 = smul.addr %s166, 128
          %s168 = scalar_lea.vmem [#allocation2], %s167
          %s169 = smul.u32 32, %s24
          %s171 = ssub.s32 2048, 2048
          %172 = vsyncadd %s165, %s171
          %s173 = smul.addr %s23, 32
          %s174 = sadd.s32 %s169, %s173
          %s175 = smul.addr %s174, 64
          %s176 = scalar_lea.hbm %s0, %s175
          %s177 = sshll.u32 %s168, 4
          %s178 = int_to_ptr.vmem [resolvable:$true] %s177
          %183 = dma.hbm_to_vmem [thread:$0]  %s176, 2048, %s178, %s165, 64, 64, 4
        $region28: #{tpu_custom_call.1} parent=23 // pred_fallthru
          _
      $region24: #{tpu_custom_call.1} parent=5 // pred_fallthru
        _
      %p184 = scmp.le.s32.totalorder 1, %s16
      %p185 = scmp.lt.s32.totalorder %s16, 3
      %p186 = pnand %p184, %p185
      %p187 = pneg %p186
      // Predicated region
      $region29: #{tpu_custom_call.1} parent=5 // pred_check
        _
      $region30: #{tpu_custom_call.1} parent=5 // pred_check_branch
        %189 = sbr.rel (%p186) target = $region32
      $region31: #{tpu_custom_call.1} parent=5 // pred_region
        %s190 = ssub.s32 %s16, 1
        %s191 = sand.u32 %s43, 1
        %s192 = scalar_lea.sflag [#allocation3], %s191
        %s193 = sand.u32 %s43, 1
        %s194 = smul.addr %s193, 128
        %s195 = scalar_lea.vmem [#allocation2], %s194
        // Predicated region
        $region33: #{tpu_custom_call.1} parent=31 // pred_check
          %p196 = pneg %p56
        $region34: #{tpu_custom_call.1} parent=31 // pred_check_branch
          %198 = sbr.rel (%p196) target = $region36
        $region35: #{tpu_custom_call.1} parent=31 // pred_region
          %199 = dma.done %s192, 2048
        $region36: #{tpu_custom_call.1} parent=31 // pred_fallthru
          _
        // Predicated region
        $region37: #{tpu_custom_call.1} parent=31 // pred_check
          %p200 = pneg %p77
        $region38: #{tpu_custom_call.1} parent=31 // pred_check_branch
          %202 = sbr.rel (%p200) target = $region40
        $region39: #{tpu_custom_call.1} parent=31 // pred_region
          %203 = dma.done [#allocation6], 1024
        $region40: #{tpu_custom_call.1} parent=31 // pred_fallthru
          _
        %s204 = sand.u32 %s43, 1
        %s205 = scalar_lea.sflag [#allocation3], %s204
        %s206 = sand.u32 %s43, 1
        %s207 = smul.addr %s206, 128
        %s208 = scalar_lea.vmem [#allocation2], %s207
        %p209 = pneg %p56
        %p210 = pneg %p53
        %p211 = pneg %p77
        %p212 = pneg %p74
        %p213 = pneg %p98
        %p214 = pneg %p95
        %p215 = pneg %p126
        %p216 = pneg %p123
        %s217 = sand.u32 %s113, 1
        %s218 = scalar_lea.sflag [#allocation4], %s217
        %s219 = sand.u32 %s113, 1
        %s220 = smul.addr %s219, 256
        %s221 = scalar_lea.vmem [#allocation7], %s220
        %s222 = smul.u32 32, %s26
        %s223 = smul.u32 32, %s26
        %v225 = vld [vmem:[%s195] sm:$0xf]
        %v226 = vld [vmem:[%s195 + $0x4] sm:$0xf]
        %v227 = vld [vmem:[%s195 + $0x8] sm:$0xf]
        %v228 = vld [vmem:[%s195 + $0xc] sm:$0xf]
        %v229 = vld [vmem:[%s195 + $0x10] sm:$0xf]
        %v230 = vld [vmem:[%s195 + $0x14] sm:$0xf]
        %v231 = vld [vmem:[%s195 + $0x18] sm:$0xf]
        %v232 = vld [vmem:[%s195 + $0x1c] sm:$0xf]
        %v233 = vld [vmem:[%s195 + $0x20] sm:$0xf]
        %v234 = vld [vmem:[%s195 + $0x24] sm:$0xf]
        %v235 = vld [vmem:[%s195 + $0x28] sm:$0xf]
        %v236 = vld [vmem:[%s195 + $0x2c] sm:$0xf]
        %v237 = vld [vmem:[%s195 + $0x30] sm:$0xf]
        %v238 = vld [vmem:[%s195 + $0x34] sm:$0xf]
        %v239 = vld [vmem:[%s195 + $0x38] sm:$0xf]
        %v240 = vld [vmem:[%s195 + $0x3c] sm:$0xf]
        %v241 = vld [vmem:[%s195 + $0x40] sm:$0xf]
        %v242 = vld [vmem:[%s195 + $0x44] sm:$0xf]
        %v243 = vld [vmem:[%s195 + $0x48] sm:$0xf]
        %v244 = vld [vmem:[%s195 + $0x4c] sm:$0xf]
        %v245 = vld [vmem:[%s195 + $0x50] sm:$0xf]
        %v246 = vld [vmem:[%s195 + $0x54] sm:$0xf]
        %v247 = vld [vmem:[%s195 + $0x58] sm:$0xf]
        %v248 = vld [vmem:[%s195 + $0x5c] sm:$0xf]
        %v249 = vld [vmem:[%s195 + $0x60] sm:$0xf]
        %v250 = vld [vmem:[%s195 + $0x64] sm:$0xf]
        %v251 = vld [vmem:[%s195 + $0x68] sm:$0xf]
        %v252 = vld [vmem:[%s195 + $0x6c] sm:$0xf]
        %v253 = vld [vmem:[%s195 + $0x70] sm:$0xf]
        %v254 = vld [vmem:[%s195 + $0x74] sm:$0xf]
        %v255 = vld [vmem:[%s195 + $0x78] sm:$0xf]
        %v256 = vld [vmem:[%s195 + $0x7c] sm:$0xf]
        %v257 = vld [vmem:[#allocation5] sm:$0xf]
        %v258 = vld [vmem:[#allocation5 + $0x4] sm:$0xf]
        %v259 = vld [vmem:[#allocation5 + $0x8] sm:$0xf]
        %v260 = vld [vmem:[#allocation5 + $0xc] sm:$0xf]
        %v261 = vld [vmem:[#allocation5 + $0x10] sm:$0xf]
        %v262 = vld [vmem:[#allocation5 + $0x14] sm:$0xf]
        %v263 = vld [vmem:[#allocation5 + $0x18] sm:$0xf]
        %v264 = vld [vmem:[#allocation5 + $0x1c] sm:$0xf]
        %v265 = vld [vmem:[#allocation5 + $0x20] sm:$0xf]
        %v266 = vld [vmem:[#allocation5 + $0x24] sm:$0xf]
        %v267 = vld [vmem:[#allocation5 + $0x28] sm:$0xf]
        %v268 = vld [vmem:[#allocation5 + $0x2c] sm:$0xf]
        %v269 = vld [vmem:[#allocation5 + $0x30] sm:$0xf]
        %v270 = vld [vmem:[#allocation5 + $0x34] sm:$0xf]
        %v271 = vld [vmem:[#allocation5 + $0x38] sm:$0xf]
        %v272 = vld [vmem:[#allocation5 + $0x3c] sm:$0xf]
        %v273 = vld [vmem:[%s2] sm:$0x1]
        %v275 = vlaneseq
        %v276 = vshrl.u32 %v275, 7
        %v277 = vsub.s32 0, %v276
        %v278 = vrot.slane %v273, %v277
        %v312 = vunpack.c.l.b16 %v225
        %v313 = vunpack.c.l.b16 %v226
        %v314 = vunpack.c.l.b16 %v227
        %v315 = vunpack.c.l.b16 %v228
        %v316 = vunpack.c.l.b16 %v229
        %v317 = vunpack.c.l.b16 %v230
        %v318 = vunpack.c.l.b16 %v231
        %v319 = vunpack.c.l.b16 %v232
        %v320 = vunpack.c.l.b16 %v233
        %v321 = vunpack.c.l.b16 %v234
        %v322 = vunpack.c.l.b16 %v235
        %v323 = vunpack.c.l.b16 %v236
        %v324 = vunpack.c.l.b16 %v237
        %v325 = vunpack.c.l.b16 %v238
        %v326 = vunpack.c.l.b16 %v239
        %v327 = vunpack.c.l.b16 %v240
        %v328 = vunpack.c.l.b16 %v241
        %v329 = vunpack.c.l.b16 %v242
        %v330 = vunpack.c.l.b16 %v243
        %v331 = vunpack.c.l.b16 %v244
        %v332 = vunpack.c.l.b16 %v245
        %v333 = vunpack.c.l.b16 %v246
        %v334 = vunpack.c.l.b16 %v247
        %v335 = vunpack.c.l.b16 %v248
        %v336 = vunpack.c.l.b16 %v249
        %v337 = vunpack.c.l.b16 %v250
        %v338 = vunpack.c.l.b16 %v251
        %v339 = vunpack.c.l.b16 %v252
        %v340 = vunpack.c.l.b16 %v253
        %v341 = vunpack.c.l.b16 %v254
        %v342 = vunpack.c.l.b16 %v255
        %v343 = vunpack.c.l.b16 %v256
        %v344 = vpack.c.b16 %v313, %v312
        %v345 = vpack.c.b16 %v315, %v314
        %v346 = vpack.c.b16 %v317, %v316
        %v347 = vpack.c.b16 %v319, %v318
        %v348 = vpack.c.b16 %v321, %v320
        %v349 = vpack.c.b16 %v323, %v322
        %v350 = vpack.c.b16 %v325, %v324
        %v351 = vpack.c.b16 %v327, %v326
        %v352 = vpack.c.b16 %v329, %v328
        %v353 = vpack.c.b16 %v331, %v330
        %v354 = vpack.c.b16 %v333, %v332
        %v355 = vpack.c.b16 %v335, %v334
        %v356 = vpack.c.b16 %v337, %v336
        %v357 = vpack.c.b16 %v339, %v338
        %v358 = vpack.c.b16 %v341, %v340
        %v359 = vpack.c.b16 %v343, %v342
        %v392 = vunpack.c.l.b16 %v257
        %v393 = vunpack.c.l.b16 %v258
        %v394 = vunpack.c.l.b16 %v259
        %v395 = vunpack.c.l.b16 %v260
        %v396 = vunpack.c.l.b16 %v261
        %v397 = vunpack.c.l.b16 %v262
        %v398 = vunpack.c.l.b16 %v263
        %v399 = vunpack.c.l.b16 %v264
        %v400 = vunpack.c.l.b16 %v265
        %v401 = vunpack.c.l.b16 %v266
        %v402 = vunpack.c.l.b16 %v267
        %v403 = vunpack.c.l.b16 %v268
        %v404 = vunpack.c.l.b16 %v269
        %v405 = vunpack.c.l.b16 %v270
        %v406 = vunpack.c.l.b16 %v271
        %v407 = vunpack.c.l.b16 %v272
        %v408 = vpack.c.b16 %v393, %v392
        %v409 = vpack.c.b16 %v395, %v394
        %v410 = vpack.c.b16 %v397, %v396
        %v411 = vpack.c.b16 %v399, %v398
        %v412 = vpack.c.b16 %v401, %v400
        %v413 = vpack.c.b16 %v403, %v402
        %v414 = vpack.c.b16 %v405, %v404
        %v415 = vpack.c.b16 %v407, %v406
        %424 = vmatprep.subr.bf16.mxu0 0
        %425 = vmatpush1.bf16.msra.mxu0 %v415
        %426 = vmatprep.subr.bf16.mxu0 0
        %427 = vmatpush1.bf16.msra.mxu0 %v414
        %428 = vmatprep.subr.bf16.mxu0 0
        %429 = vmatpush1.bf16.msra.mxu0 %v413
        %430 = vmatprep.subr.bf16.mxu0 0
        %431 = vmatpush1.bf16.msra.mxu0 %v412
        %432 = vmatprep.subr.bf16.mxu0 0
        %433 = vmatpush1.bf16.msra.mxu0 %v411
        %434 = vmatprep.subr.bf16.mxu0 0
        %435 = vmatpush1.bf16.msra.mxu0 %v410
        %436 = vmatprep.subr.bf16.mxu0 0
        %437 = vmatpush1.bf16.msra.mxu0 %v409
        %438 = vmatprep.subr.bf16.mxu0 0
        %439 = vmatpush1.bf16.msra.mxu0 %v408
        %440 = vmatprep.subr.bf16.mxu0 0
        %441 = vmatpush2.bf16.msra.mxu0 0
        %442 = vmatprep.subr.bf16.mxu0 0
        %443 = vmatpush2.bf16.msra.mxu0 0
        %444 = vmatprep.subr.bf16.mxu0 0
        %445 = vmatpush2.bf16.msra.mxu0 0
        %446 = vmatprep.subr.bf16.mxu0 0
        %447 = vmatpush2.bf16.msra.mxu0 0
        %448 = vmatprep.subr.bf16.mxu0 0
        %449 = vmatpush2.bf16.msra.mxu0 0
        %450 = vmatprep.subr.bf16.mxu0 0
        %451 = vmatpush2.bf16.msra.mxu0 0
        %452 = vmatprep.subr.bf16.mxu0 0
        %453 = vmatpush2.bf16.msra.mxu0 0
        %454 = vmatprep.subr.bf16.mxu0 0
        %455 = vmatpush2.bf16.msra.mxu0 0
        %456 = vmatprep.mubr.bf16.mxu0 0
        %457 = vmatmul.mubr.bf16.gmra.mxu0 %v344
        %v458 = vpop.f32.mrf.mxu0
        %v459 = vadd.f32 %v278, %v458
        %v460 = vpop.f32.mrf.mxu0
        %v461 = vpop.f32.mrf.mxu0
        %v462 = vadd.f32 %v278, %v461
        %v463 = vpop.f32.mrf.mxu0
        %464 = vmatprep.mubr.bf16.mxu0 0
        %465 = vmatmul.mubr.bf16.gmra.mxu0 %v345
        %v466 = vpop.f32.mrf.mxu0
        %v467 = vadd.f32 %v278, %v466
        %v468 = vpop.f32.mrf.mxu0
        %v469 = vpop.f32.mrf.mxu0
        %v470 = vadd.f32 %v278, %v469
        %v471 = vpop.f32.mrf.mxu0
        %472 = vmatprep.mubr.bf16.mxu0 0
        %473 = vmatmul.mubr.bf16.gmra.mxu0 %v346
        %v474 = vpop.f32.mrf.mxu0
        %v475 = vadd.f32 %v278, %v474
        %v476 = vpop.f32.mrf.mxu0
        %v477 = vpop.f32.mrf.mxu0
        %v478 = vadd.f32 %v278, %v477
        %v479 = vpop.f32.mrf.mxu0
        %480 = vmatprep.mubr.bf16.mxu0 0
        %481 = vmatmul.mubr.bf16.gmra.mxu0 %v347
        %v482 = vpop.f32.mrf.mxu0
        %v483 = vadd.f32 %v278, %v482
        %v484 = vpop.f32.mrf.mxu0
        %v485 = vpop.f32.mrf.mxu0
        %v486 = vadd.f32 %v278, %v485
        %v487 = vpop.f32.mrf.mxu0
        %488 = vmatprep.mubr.bf16.mxu0 0
        %489 = vmatmul.mubr.bf16.gmra.mxu0 %v348
        %v490 = vpop.f32.mrf.mxu0
        %v491 = vadd.f32 %v278, %v490
        %v492 = vpop.f32.mrf.mxu0
        %v493 = vpop.f32.mrf.mxu0
        %v494 = vadd.f32 %v278, %v493
        %v495 = vpop.f32.mrf.mxu0
        %496 = vmatprep.mubr.bf16.mxu0 0
        %497 = vmatmul.mubr.bf16.gmra.mxu0 %v349
        %v498 = vpop.f32.mrf.mxu0
        %v499 = vadd.f32 %v278, %v498
        %v500 = vpop.f32.mrf.mxu0
        %v501 = vpop.f32.mrf.mxu0
        %v502 = vadd.f32 %v278, %v501
        %v503 = vpop.f32.mrf.mxu0
        %504 = vmatprep.mubr.bf16.mxu0 0
        %505 = vmatmul.mubr.bf16.gmra.mxu0 %v350
        %v506 = vpop.f32.mrf.mxu0
        %v507 = vadd.f32 %v278, %v506
        %v508 = vpop.f32.mrf.mxu0
        %v509 = vpop.f32.mrf.mxu0
        %v510 = vadd.f32 %v278, %v509
        %v511 = vpop.f32.mrf.mxu0
        %512 = vmatprep.mubr.bf16.mxu0 0
        %513 = vmatmul.mubr.bf16.gmra.mxu0 %v351
        %v514 = vpop.f32.mrf.mxu0
        %v515 = vadd.f32 %v278, %v514
        %v516 = vpop.f32.mrf.mxu0
        %v517 = vpop.f32.mrf.mxu0
        %v518 = vadd.f32 %v278, %v517
        %v519 = vpop.f32.mrf.mxu0
        %520 = vmatprep.mubr.bf16.mxu0 0
        %521 = vmatmul.mubr.bf16.gmra.mxu0 %v352
        %v522 = vpop.f32.mrf.mxu0
        %v523 = vadd.f32 %v278, %v522
        %v524 = vpop.f32.mrf.mxu0
        %v525 = vpop.f32.mrf.mxu0
        %v526 = vadd.f32 %v278, %v525
        %v527 = vpop.f32.mrf.mxu0
        %528 = vmatprep.mubr.bf16.mxu0 0
        %529 = vmatmul.mubr.bf16.gmra.mxu0 %v353
        %v530 = vpop.f32.mrf.mxu0
        %v531 = vadd.f32 %v278, %v530
        %v532 = vpop.f32.mrf.mxu0
        %v533 = vpop.f32.mrf.mxu0
        %v534 = vadd.f32 %v278, %v533
        %v535 = vpop.f32.mrf.mxu0
        %536 = vmatprep.mubr.bf16.mxu0 0
        %537 = vmatmul.mubr.bf16.gmra.mxu0 %v354
        %v538 = vpop.f32.mrf.mxu0
        %v539 = vadd.f32 %v278, %v538
        %v540 = vpop.f32.mrf.mxu0
        %v541 = vpop.f32.mrf.mxu0
        %v542 = vadd.f32 %v278, %v541
        %v543 = vpop.f32.mrf.mxu0
        %544 = vmatprep.mubr.bf16.mxu0 0
        %545 = vmatmul.mubr.bf16.gmra.mxu0 %v355
        %v546 = vpop.f32.mrf.mxu0
        %v547 = vadd.f32 %v278, %v546
        %v548 = vpop.f32.mrf.mxu0
        %v549 = vpop.f32.mrf.mxu0
        %v550 = vadd.f32 %v278, %v549
        %v551 = vpop.f32.mrf.mxu0
        %552 = vmatprep.mubr.bf16.mxu0 0
        %553 = vmatmul.mubr.bf16.gmra.mxu0 %v356
        %v554 = vpop.f32.mrf.mxu0
        %v555 = vadd.f32 %v278, %v554
        %v556 = vpop.f32.mrf.mxu0
        %v557 = vpop.f32.mrf.mxu0
        %v558 = vadd.f32 %v278, %v557
        %v559 = vpop.f32.mrf.mxu0
        %560 = vmatprep.mubr.bf16.mxu0 0
        %561 = vmatmul.mubr.bf16.gmra.mxu0 %v357
        %v562 = vpop.f32.mrf.mxu0
        %v563 = vadd.f32 %v278, %v562
        %v564 = vpop.f32.mrf.mxu0
        %v565 = vpop.f32.mrf.mxu0
        %v566 = vadd.f32 %v278, %v565
        %v567 = vpop.f32.mrf.mxu0
        %568 = vmatprep.mubr.bf16.mxu0 0
        %569 = vmatmul.mubr.bf16.gmra.mxu0 %v358
        %v570 = vpop.f32.mrf.mxu0
        %v571 = vadd.f32 %v278, %v570
        %v572 = vpop.f32.mrf.mxu0
        %v573 = vpop.f32.mrf.mxu0
        %v574 = vadd.f32 %v278, %v573
        %v575 = vpop.f32.mrf.mxu0
        %576 = vmatprep.mubr.bf16.mxu0 0
        %577 = vmatmul.mubr.bf16.gmra.mxu0 %v359
        %v578 = vpop.f32.mrf.mxu0
        %v579 = vadd.f32 %v278, %v578
        %v580 = vpop.f32.mrf.mxu0
        %v581 = vpop.f32.mrf.mxu0
        %v582 = vadd.f32 %v278, %v581
        %v583 = vpop.f32.mrf.mxu0
        %584 = vdwg.mxu0
        %585 = vst [vmem:[%s221] sm:$0xff] %v459
        %586 = vst [vmem:[%s221 + $0x8] sm:$0xff] %v462
        %587 = vst [vmem:[%s221 + $0x10] sm:$0xff] %v467
        %588 = vst [vmem:[%s221 + $0x18] sm:$0xff] %v470
        %589 = vst [vmem:[%s221 + $0x20] sm:$0xff] %v475
        %590 = vst [vmem:[%s221 + $0x28] sm:$0xff] %v478
        %591 = vst [vmem:[%s221 + $0x30] sm:$0xff] %v483
        %592 = vst [vmem:[%s221 + $0x38] sm:$0xff] %v486
        %593 = vst [vmem:[%s221 + $0x40] sm:$0xff] %v491
        %594 = vst [vmem:[%s221 + $0x48] sm:$0xff] %v494
        %595 = vst [vmem:[%s221 + $0x50] sm:$0xff] %v499
        %596 = vst [vmem:[%s221 + $0x58] sm:$0xff] %v502
        %597 = vst [vmem:[%s221 + $0x60] sm:$0xff] %v507
        %598 = vst [vmem:[%s221 + $0x68] sm:$0xff] %v510
        %599 = vst [vmem:[%s221 + $0x70] sm:$0xff] %v515
        %600 = vst [vmem:[%s221 + $0x78] sm:$0xff] %v518
        %601 = vst [vmem:[%s221 + $0x80] sm:$0xff] %v523
        %602 = vst [vmem:[%s221 + $0x88] sm:$0xff] %v526
        %603 = vst [vmem:[%s221 + $0x90] sm:$0xff] %v531
        %604 = vst [vmem:[%s221 + $0x98] sm:$0xff] %v534
        %605 = vst [vmem:[%s221 + $0xa0] sm:$0xff] %v539
        %606 = vst [vmem:[%s221 + $0xa8] sm:$0xff] %v542
        %607 = vst [vmem:[%s221 + $0xb0] sm:$0xff] %v547
        %608 = vst [vmem:[%s221 + $0xb8] sm:$0xff] %v550
        %609 = vst [vmem:[%s221 + $0xc0] sm:$0xff] %v555
        %610 = vst [vmem:[%s221 + $0xc8] sm:$0xff] %v558
        %611 = vst [vmem:[%s221 + $0xd0] sm:$0xff] %v563
        %612 = vst [vmem:[%s221 + $0xd8] sm:$0xff] %v566
        %613 = vst [vmem:[%s221 + $0xe0] sm:$0xff] %v571
        %614 = vst [vmem:[%s221 + $0xe8] sm:$0xff] %v574
        %615 = vst [vmem:[%s221 + $0xf0] sm:$0xff] %v579
        %616 = vst [vmem:[%s221 + $0xf8] sm:$0xff] %v582
        %s617 = sand.u32 %s113, 1
        %s618 = scalar_lea.sflag [#allocation4], %s617
        %s619 = sand.u32 %s113, 1
        %s620 = smul.addr %s619, 256
        %s621 = scalar_lea.vmem [#allocation7], %s620
        // Predicated region
        $region41: #{tpu_custom_call.1} parent=31 // pred_check
          %p622 = pneg %p123
        $region42: #{tpu_custom_call.1} parent=31 // pred_check_branch
          %624 = sbr.rel (%p622) target = $region44
        $region43: #{tpu_custom_call.1} parent=31 // pred_region
          %s625 = smul.u32 32, %s26
          %s627 = ssub.s32 4096, 4096
          %628 = vsyncadd %s618, %s627
          %s629 = smul.addr %s25, 32
          %s630 = sadd.s32 %s625, %s629
          %s631 = smul.addr %s630, 128
          %s632 = scalar_lea.hbm %s3, %s631
          %s633 = sshll.u32 %s621, 4
          %s634 = int_to_ptr.vmem [resolvable:$true] %s633
          %639 = dma.vmem_to_hbm [thread:$0]  %s634, 4096, %s632, %s618, 128, 128, 8
        $region44: #{tpu_custom_call.1} parent=31 // pred_fallthru
          _
      $region32: #{tpu_custom_call.1} parent=5 // pred_fallthru
        _
      %p640 = scmp.le.s32.totalorder 2, %s16
      // Predicated region
      $region45: #{tpu_custom_call.1} parent=5 // pred_check
        %p641 = pneg %p640
      $region46: #{tpu_custom_call.1} parent=5 // pred_check_branch
        %643 = sbr.rel (%p641) target = $region48
      $region47: #{tpu_custom_call.1} parent=5 // pred_region
        %s644 = ssub.s32 %s16, 2
        // Predicated region
        $region49: #{tpu_custom_call.1} parent=47 // pred_check
          %p645 = pneg %p129
        $region50: #{tpu_custom_call.1} parent=47 // pred_check_branch
          %647 = sbr.rel (%p645) target = $region52
        $region51: #{tpu_custom_call.1} parent=47 // pred_region
          %s648 = sand.u32 %s114, 1
          %s649 = scalar_lea.sflag [#allocation4], %s648
          %s650 = sand.u32 %s114, 1
          %s651 = smul.addr %s650, 256
          %s652 = scalar_lea.vmem [#allocation7], %s651
          %653 = dma.done %s649, 4096
        $region52: #{tpu_custom_call.1} parent=47 // pred_fallthru
          _
      $region48: #{tpu_custom_call.1} parent=5 // pred_fallthru
        _
    $region6: #{tpu_custom_call.1} parent=1 // loop_footer
      %s20 = sadd.s32 1, %s16
    $region7: #{tpu_custom_call.1} parent=1 // loop_footer_branch
      %15 = sbr.rel target = $region3
    $region8: #{tpu_custom_call.1} parent=1 // loop_exit
      _
    %654 = vsyncpa [#allocation3], 1
    %s655 = scalar_lea.sflag [#allocation3], 1
    %656 = vsyncpa %s655, 1
    %657 = vsyncpa [#allocation6], 1
    %658 = vsyncpa [#allocation4], 1
    %s659 = scalar_lea.sflag [#allocation4], 1
    %660 = vsyncpa %s659, 1

// kernel: tpu_custom_call.1
$region0: #{tpu_custom_call.1}
  #allocation0 [shape = 'u32[]', space=smem, size = 0x4, offset = 0x4, fixed_abs, tag = 'smem constant byte address 0x4 - core index']
  #allocation1 [shape = 'u32[144,128]{1,0:T(1,128)}', space=vmem, size = 0x12000, scoped, tag = 'internal scratch']
  %s0 = inlined_call_operand.hbm [shape: bf16[2,256,128], index: 0, kind: input, shape index: {}]
  %s1 = inlined_call_operand.hbm [shape: bf16[128,128], index: 1, kind: input, shape index: {}]
  %s2 = inlined_call_operand.vmem [shape: f32[1,128], index: 2, kind: input, shape index: {}]
  %s3 = inlined_call_operand.hbm [shape: f32[2,256,128], index: 3, kind: output, shape index: {}]
  %s4 = sld [smem:[#allocation0]]
  $region53: #{tpu_custom_call.1} parent=0
    _
  %s6 = ssub.s32 1, %s4
  %s7 = scalar_select 0, %s6, %s4
  $region1: #{tpu_custom_call.1} parent=0
    #allocation2 [shape = 'u8[131072]{0}', space=vmem, size = 0x20000, scoped, tag = 'input window, operand 0']
    #allocation3 [shape = 's32[2]{0}', space=sflag, size = 0x8, scoped, tag = 'scoped memory for tpu_custom_call.1']
    #allocation4 [shape = 's32[2]{0}', space=sflag, size = 0x8, scoped, tag = 'scoped memory for tpu_custom_call.1']
    #allocation5 [shape = 'u8[32768]{0}', space=vmem, size = 0x8000, scoped, tag = 'input window, operand 1, single buffered']
    #allocation6 [shape = 's32[1]{0}', space=sflag, size = 0x4, scoped, tag = 'scoped memory for tpu_custom_call.1']
    #allocation7 [shape = 'u8[262144]{0}', space=vmem, size = 0x40000, scoped, tag = 'output window, operand 0']
    %8 = vsyncpa [#allocation3], 0
    %s9 = scalar_lea.sflag [#allocation3], 1
    %10 = vsyncpa %s9, 0
    %11 = vsyncpa [#allocation6], 0
    %12 = vsyncpa [#allocation4], 0
    %s13 = scalar_lea.sflag [#allocation4], 1
    %14 = vsyncpa %s13, 0
    loop: start=0, step=1, limit=4
    $region2: #{tpu_custom_call.1} parent=1 // loop_pre_header
      _
    $region3: #{tpu_custom_call.1} parent=1 // loop_header
      %s16 = sphi 0, %s20
      %p17 = scmp.ge.s32.totalorder %s16, 4
      %s23 = sphi 0, %s35
      %s24 = sphi 0, %s31
      %s25 = sphi 0, %s23
      %s26 = sphi 0, %s24
      %s27 = sphi 0, %s25
      %s28 = sphi 0, %s26
      %s40 = sphi 0, %s42
      %s43 = sphi 0, %s40
      %s44 = sphi 0, %s43
      %s60 = sphi 0, %s44
      %s64 = sphi 0, %s64
      %s66 = sphi 0, %s64
      %s67 = sphi 0, %s66
      %s81 = sphi 0, %s67
      %s85 = sphi 0, %s85
      %s87 = sphi 0, %s85
      %s88 = sphi 0, %s87
      %s102 = sphi 0, %s88
      %s110 = sphi 0, %s112
      %s113 = sphi 0, %s110
      %s114 = sphi 0, %s113
      %s130 = sphi 0, %s114
    $region4: #{tpu_custom_call.1} parent=1 // loop_header_branch
      %19 = sbr.rel (%p17) target = $region8
    $region5: #{tpu_custom_call.1} parent=1 // loop_body
      %s21 = ssub.s32 %s16, 1
      %s22 = ssub.s32 %s16, 2
      %s29 = sadd.s32 1, %s24
      %p30 = scmp.ge.s32.totalorder %s29, 1
      %s31 = scalar_select %p30, 0, %s29
      %s32 = sadd.s32 1, %s23
      %s33 = scalar_select %p30, %s32, %s23
      %p34 = scmp.ge.s32.totalorder %s33, 2
      %s35 = scalar_select %p34, 0, %s33
      %s36 = ssub.s32 %s23, %s35
      %s37 = ssub.s32 %s24, %s31
      %s38 = sor.u32 %s36, %s37
      %p39 = scmp.eq.s32.totalorder %s38, 0
      %s41 = sadd.s32 %s40, 1
      %s42 = scalar_select %p39, %s40, %s41
      %p45 = pneg %p39
      %p46 = scmp.eq.s32.totalorder %s16, 1
      %p47 = por %p45, %p46
      %p48 = scmp.ne.s32.totalorder %s40, %s43
      %p49 = scmp.eq.s32.totalorder %s16, 0
      %p50 = por %p48, %p49
      %p51 = scmp.ne.s32.totalorder %s40, %s43
      %p52 = scmp.eq.s32.totalorder %s21, 1
      %p53 = por %p51, %p52
      %p54 = scmp.ne.s32.totalorder %s43, %s44
      %p55 = scmp.eq.s32.totalorder %s21, 0
      %p56 = por %p54, %p55
      %p57 = scmp.ne.s32.totalorder %s43, %s44
      %p58 = scmp.eq.s32.totalorder %s22, 1
      %p59 = por %p57, %p58
      %p61 = scmp.ne.s32.totalorder %s44, %s60
      %p62 = scmp.eq.s32.totalorder %s22, 0
      %p63 = por %p61, %p62
      %s65 = sadd.s32 %s64, 1
      %p68 = scmp.eq.s32.totalorder %s16, 1
      %p69 = scmp.ne.s32.totalorder %s64, %s66
      %p70 = scmp.eq.s32.totalorder %s16, 0
      %p71 = por %p69, %p70
      %p72 = scmp.ne.s32.totalorder %s64, %s66
      %p73 = scmp.eq.s32.totalorder %s21, 1
      %p74 = por %p72, %p73
      %p75 = scmp.ne.s32.totalorder %s66, %s67
      %p76 = scmp.eq.s32.totalorder %s21, 0
      %p77 = por %p75, %p76
      %p78 = scmp.ne.s32.totalorder %s66, %s67
      %p79 = scmp.eq.s32.totalorder %s22, 1
      %p80 = por %p78, %p79
      %p82 = scmp.ne.s32.totalorder %s67, %s81
      %p83 = scmp.eq.s32.totalorder %s22, 0
      %p84 = por %p82, %p83
      %s86 = sadd.s32 %s85, 1
      %p89 = scmp.eq.s32.totalorder %s16, 1
      %p90 = scmp.ne.s32.totalorder %s85, %s87
      %p91 = scmp.eq.s32.totalorder %s16, 0
      %p92 = por %p90, %p91
      %p93 = scmp.ne.s32.totalorder %s85, %s87
      %p94 = scmp.eq.s32.totalorder %s21, 1
      %p95 = por %p93, %p94
      %p96 = scmp.ne.s32.totalorder %s87, %s88
      %p97 = scmp.eq.s32.totalorder %s21, 0
      %p98 = por %p96, %p97
      %p99 = scmp.ne.s32.totalorder %s87, %s88
      %p100 = scmp.eq.s32.totalorder %s22, 1
      %p101 = por %p99, %p100
      %p103 = scmp.ne.s32.totalorder %s88, %s102
      %p104 = scmp.eq.s32.totalorder %s22, 0
      %p105 = por %p103, %p104
      %s106 = ssub.s32 %s23, %s35
      %s107 = ssub.s32 %s24, %s31
      %s108 = sor.u32 %s106, %s107
      %p109 = scmp.eq.s32.totalorder %s108, 0
      %s111 = sadd.s32 %s110, 1
      %s112 = scalar_select %p109, %s110, %s111
      %p115 = pneg %p109
      %p116 = scmp.eq.s32.totalorder %s16, 1
      %p117 = por %p115, %p116
      %p118 = scmp.ne.s32.totalorder %s110, %s113
      %p119 = scmp.eq.s32.totalorder %s16, 0
      %p120 = por %p118, %p119
      %p121 = scmp.ne.s32.totalorder %s110, %s113
      %p122 = scmp.eq.s32.totalorder %s21, 1
      %p123 = por %p121, %p122
      %p124 = scmp.ne.s32.totalorder %s113, %s114
      %p125 = scmp.eq.s32.totalorder %s21, 0
      %p126 = por %p124, %p125
      %p127 = scmp.ne.s32.totalorder %s113, %s114
      %p128 = scmp.eq.s32.totalorder %s22, 1
      %p129 = por %p127, %p128
      %p131 = scmp.ne.s32.totalorder %s114, %s130
      %p132 = scmp.eq.s32.totalorder %s22, 0
      %p133 = por %p131, %p132
      %p134 = scmp.le.s32.totalorder 1, %s16
      %p135 = scmp.lt.s32.totalorder %s16, 3
      %p136 = pnand %p134, %p135
      %p137 = pneg %p136
      // Predicated region
      $region9: #{tpu_custom_call.1} parent=5 // pred_check
        _
      $region10: #{tpu_custom_call.1} parent=5 // pred_check_branch
        %139 = sbr.rel (%p136) target = $region12
      $region11: #{tpu_custom_call.1} parent=5 // pred_region
        %s140 = ssub.s32 %s16, 1
        // Predicated region
        $region13: #{tpu_custom_call.1} parent=11 // pred_check
          %p141 = pneg %p77
        $region14: #{tpu_custom_call.1} parent=11 // pred_check_branch
          %143 = sbr.rel (%p141) target = $region16
        $region15: #{tpu_custom_call.1} parent=11 // pred_region
          %s145 = ssub.s32 1024, 1024
          %146 = vsyncadd [#allocation6], %s145
          %s147 = sshll.u32 [#allocation5], 4
          %s148 = int_to_ptr.vmem [resolvable:$true] %s147
          %153 = dma.hbm_to_vmem [thread:$0]  %s1, 1024, %s148, [#allocation6], 64, 64, 4
        $region16: #{tpu_custom_call.1} parent=11 // pred_fallthru
          _
        // Predicated region
        $region17: #{tpu_custom_call.1} parent=11 // pred_check
          %p154 = pneg %p98
        $region18: #{tpu_custom_call.1} parent=11 // pred_check_branch
          %156 = sbr.rel (%p154) target = $region20
        $region19: #{tpu_custom_call.1} parent=11 // pred_region
          _
        $region20: #{tpu_custom_call.1} parent=11 // pred_fallthru
          _
      $region12: #{tpu_custom_call.1} parent=5 // pred_fallthru
        _
      %p157 = scmp.lt.s32.totalorder %s16, 2
      // Predicated region
      $region21: #{tpu_custom_call.1} parent=5 // pred_check
        %p158 = pneg %p157
      $region22: #{tpu_custom_call.1} parent=5 // pred_check_branch
        %160 = sbr.rel (%p158) target = $region24
      $region23: #{tpu_custom_call.1} parent=5 // pred_region
        // Predicated region
        $region25: #{tpu_custom_call.1} parent=23 // pred_check
          %p161 = pneg %p50
        $region26: #{tpu_custom_call.1} parent=23 // pred_check_branch
          %163 = sbr.rel (%p161) target = $region28
        $region27: #{tpu_custom_call.1} parent=23 // pred_region
          %s164 = sand.u32 %s40, 1
          %s165 = scalar_lea.sflag [#allocation3], %s164
          %s166 = sand.u32 %s40, 1
          %s167 = smul.addr %s166, 128
          %s168 = scalar_lea.vmem [#allocation2], %s167
          %s169 = smul.u32 32, %s24
          %s171 = ssub.s32 2048, 2048
          %172 = vsyncadd %s165, %s171
          %s173 = smul.addr %s23, 32
          %s174 = sadd.s32 %s169, %s173
          %s175 = smul.addr %s174, 64
          %s176 = scalar_lea.hbm %s0, %s175
          %s177 = sshll.u32 %s168, 4
          %s178 = int_to_ptr.vmem [resolvable:$true] %s177
          %183 = dma.hbm_to_vmem [thread:$0]  %s176, 2048, %s178, %s165, 64, 64, 4
        $region28: #{tpu_custom_call.1} parent=23 // pred_fallthru
          _
      $region24: #{tpu_custom_call.1} parent=5 // pred_fallthru
        _
      %p184 = scmp.le.s32.totalorder 1, %s16
      %p185 = scmp.lt.s32.totalorder %s16, 3
      %p186 = pnand %p184, %p185
      %p187 = pneg %p186
      // Predicated region
      $region29: #{tpu_custom_call.1} parent=5 // pred_check
        _
      $region30: #{tpu_custom_call.1} parent=5 // pred_check_branch
        %189 = sbr.rel (%p186) target = $region32
      $region31: #{tpu_custom_call.1} parent=5 // pred_region
        %s190 = ssub.s32 %s16, 1
        %s191 = sand.u32 %s43, 1
        %s192 = scalar_lea.sflag [#allocation3], %s191
        %s193 = sand.u32 %s43, 1
        %s194 = smul.addr %s193, 128
        %s195 = scalar_lea.vmem [#allocation2], %s194
        // Predicated region
        $region33: #{tpu_custom_call.1} parent=31 // pred_check
          %p196 = pneg %p56
        $region34: #{tpu_custom_call.1} parent=31 // pred_check_branch
          %198 = sbr.rel (%p196) target = $region36
        $region35: #{tpu_custom_call.1} parent=31 // pred_region
          %199 = dma.done %s192, 2048
        $region36: #{tpu_custom_call.1} parent=31 // pred_fallthru
          _
        // Predicated region
        $region37: #{tpu_custom_call.1} parent=31 // pred_check
          %p200 = pneg %p77
        $region38: #{tpu_custom_call.1} parent=31 // pred_check_branch
          %202 = sbr.rel (%p200) target = $region40
        $region39: #{tpu_custom_call.1} parent=31 // pred_region
          %203 = dma.done [#allocation6], 1024
        $region40: #{tpu_custom_call.1} parent=31 // pred_fallthru
          _
        %s204 = sand.u32 %s43, 1
        %s205 = scalar_lea.sflag [#allocation3], %s204
        %s206 = sand.u32 %s43, 1
        %s207 = smul.addr %s206, 128
        %s208 = scalar_lea.vmem [#allocation2], %s207
        %p209 = pneg %p56
        %p210 = pneg %p53
        %p211 = pneg %p77
        %p212 = pneg %p74
        %p213 = pneg %p98
        %p214 = pneg %p95
        %p215 = pneg %p126
        %p216 = pneg %p123
        %s217 = sand.u32 %s113, 1
        %s218 = scalar_lea.sflag [#allocation4], %s217
        %s219 = sand.u32 %s113, 1
        %s220 = smul.addr %s219, 256
        %s221 = scalar_lea.vmem [#allocation7], %s220
        %s222 = smul.u32 32, %s26
        %s223 = smul.u32 32, %s26
        %v225 = vld [vmem:[%s195] sm:$0xf]
        %v226 = vld [vmem:[%s195 + $0x4] sm:$0xf]
        %v227 = vld [vmem:[%s195 + $0x8] sm:$0xf]
        %v228 = vld [vmem:[%s195 + $0xc] sm:$0xf]
        %v229 = vld [vmem:[%s195 + $0x10] sm:$0xf]
        %v230 = vld [vmem:[%s195 + $0x14] sm:$0xf]
        %v231 = vld [vmem:[%s195 + $0x18] sm:$0xf]
        %v232 = vld [vmem:[%s195 + $0x1c] sm:$0xf]
        %v233 = vld [vmem:[%s195 + $0x20] sm:$0xf]
        %v234 = vld [vmem:[%s195 + $0x24] sm:$0xf]
        %v235 = vld [vmem:[%s195 + $0x28] sm:$0xf]
        %v236 = vld [vmem:[%s195 + $0x2c] sm:$0xf]
        %v237 = vld [vmem:[%s195 + $0x30] sm:$0xf]
        %v238 = vld [vmem:[%s195 + $0x34] sm:$0xf]
        %v239 = vld [vmem:[%s195 + $0x38] sm:$0xf]
        %v240 = vld [vmem:[%s195 + $0x3c] sm:$0xf]
        %v241 = vld [vmem:[%s195 + $0x40] sm:$0xf]
        %v242 = vld [vmem:[%s195 + $0x44] sm:$0xf]
        %v243 = vld [vmem:[%s195 + $0x48] sm:$0xf]
        %v244 = vld [vmem:[%s195 + $0x4c] sm:$0xf]
        %v245 = vld [vmem:[%s195 + $0x50] sm:$0xf]
        %v246 = vld [vmem:[%s195 + $0x54] sm:$0xf]
        %v247 = vld [vmem:[%s195 + $0x58] sm:$0xf]
        %v248 = vld [vmem:[%s195 + $0x5c] sm:$0xf]
        %v249 = vld [vmem:[%s195 + $0x60] sm:$0xf]
        %v250 = vld [vmem:[%s195 + $0x64] sm:$0xf]
        %v251 = vld [vmem:[%s195 + $0x68] sm:$0xf]
        %v252 = vld [vmem:[%s195 + $0x6c] sm:$0xf]
        %v253 = vld [vmem:[%s195 + $0x70] sm:$0xf]
        %v254 = vld [vmem:[%s195 + $0x74] sm:$0xf]
        %v255 = vld [vmem:[%s195 + $0x78] sm:$0xf]
        %v256 = vld [vmem:[%s195 + $0x7c] sm:$0xf]
        %v257 = vld [vmem:[#allocation5] sm:$0xf]
        %v258 = vld [vmem:[#allocation5 + $0x4] sm:$0xf]
        %v259 = vld [vmem:[#allocation5 + $0x8] sm:$0xf]
        %v260 = vld [vmem:[#allocation5 + $0xc] sm:$0xf]
        %v261 = vld [vmem:[#allocation5 + $0x10] sm:$0xf]
        %v262 = vld [vmem:[#allocation5 + $0x14] sm:$0xf]
        %v263 = vld [vmem:[#allocation5 + $0x18] sm:$0xf]
        %v264 = vld [vmem:[#allocation5 + $0x1c] sm:$0xf]
        %v265 = vld [vmem:[#allocation5 + $0x20] sm:$0xf]
        %v266 = vld [vmem:[#allocation5 + $0x24] sm:$0xf]
        %v267 = vld [vmem:[#allocation5 + $0x28] sm:$0xf]
        %v268 = vld [vmem:[#allocation5 + $0x2c] sm:$0xf]
        %v269 = vld [vmem:[#allocation5 + $0x30] sm:$0xf]
        %v270 = vld [vmem:[#allocation5 + $0x34] sm:$0xf]
        %v271 = vld [vmem:[#allocation5 + $0x38] sm:$0xf]
        %v272 = vld [vmem:[#allocation5 + $0x3c] sm:$0xf]
        %v273 = vld [vmem:[%s2] sm:$0x1]
        %v275 = vlaneseq
        %v276 = vshrl.u32 %v275, 7
        %v277 = vsub.s32 0, %v276
        %v278 = vrot.slane %v273, %v277
        %v312 = vunpack.c.l.b16 %v225
        %v313 = vunpack.c.l.b16 %v226
        %v314 = vunpack.c.l.b16 %v227
        %v315 = vunpack.c.l.b16 %v228
        %v316 = vunpack.c.l.b16 %v229
        %v317 = vunpack.c.l.b16 %v230
        %v318 = vunpack.c.l.b16 %v231
        %v319 = vunpack.c.l.b16 %v232
        %v320 = vunpack.c.l.b16 %v233
        %v321 = vunpack.c.l.b16 %v234
        %v322 = vunpack.c.l.b16 %v235
        %v323 = vunpack.c.l.b16 %v236
        %v324 = vunpack.c.l.b16 %v237
        %v325 = vunpack.c.l.b16 %v238
        %v326 = vunpack.c.l.b16 %v239
        %v327 = vunpack.c.l.b16 %v240
        %v328 = vunpack.c.l.b16 %v241
        %v329 = vunpack.c.l.b16 %v242
        %v330 = vunpack.c.l.b16 %v243
        %v331 = vunpack.c.l.b16 %v244
        %v332 = vunpack.c.l.b16 %v245
        %v333 = vunpack.c.l.b16 %v246
        %v334 = vunpack.c.l.b16 %v247
        %v335 = vunpack.c.l.b16 %v248
        %v336 = vunpack.c.l.b16 %v249
        %v337 = vunpack.c.l.b16 %v250
        %v338 = vunpack.c.l.b16 %v251
        %v339 = vunpack.c.l.b16 %v252
        %v340 = vunpack.c.l.b16 %v253
        %v341 = vunpack.c.l.b16 %v254
        %v342 = vunpack.c.l.b16 %v255
        %v343 = vunpack.c.l.b16 %v256
        %v344 = vpack.c.b16 %v313, %v312
        %v345 = vpack.c.b16 %v315, %v314
        %v346 = vpack.c.b16 %v317, %v316
        %v347 = vpack.c.b16 %v319, %v318
        %v348 = vpack.c.b16 %v321, %v320
        %v349 = vpack.c.b16 %v323, %v322
        %v350 = vpack.c.b16 %v325, %v324
        %v351 = vpack.c.b16 %v327, %v326
        %v352 = vpack.c.b16 %v329, %v328
        %v353 = vpack.c.b16 %v331, %v330
        %v354 = vpack.c.b16 %v333, %v332
        %v355 = vpack.c.b16 %v335, %v334
        %v356 = vpack.c.b16 %v337, %v336
        %v357 = vpack.c.b16 %v339, %v338
        %v358 = vpack.c.b16 %v341, %v340
        %v359 = vpack.c.b16 %v343, %v342
        %v392 = vunpack.c.l.b16 %v257
        %v393 = vunpack.c.l.b16 %v258
        %v394 = vunpack.c.l.b16 %v259
        %v395 = vunpack.c.l.b16 %v260
        %v396 = vunpack.c.l.b16 %v261
        %v397 = vunpack.c.l.b16 %v262
        %v398 = vunpack.c.l.b16 %v263
        %v399 = vunpack.c.l.b16 %v264
        %v400 = vunpack.c.l.b16 %v265
        %v401 = vunpack.c.l.b16 %v266
        %v402 = vunpack.c.l.b16 %v267
        %v403 = vunpack.c.l.b16 %v268
        %v404 = vunpack.c.l.b16 %v269
        %v405 = vunpack.c.l.b16 %v270
        %v406 = vunpack.c.l.b16 %v271
        %v407 = vunpack.c.l.b16 %v272
        %v408 = vpack.c.b16 %v393, %v392
        %v409 = vpack.c.b16 %v395, %v394
        %v410 = vpack.c.b16 %v397, %v396
        %v411 = vpack.c.b16 %v399, %v398
        %v412 = vpack.c.b16 %v401, %v400
        %v413 = vpack.c.b16 %v403, %v402
        %v414 = vpack.c.b16 %v405, %v404
        %v415 = vpack.c.b16 %v407, %v406
        %424 = vmatprep.subr.bf16.mxu0 0
        %425 = vmatpush1.bf16.msra.mxu0 %v415
        %426 = vmatprep.subr.bf16.mxu0 0
        %427 = vmatpush1.bf16.msra.mxu0 %v414
        %428 = vmatprep.subr.bf16.mxu0 0
        %429 = vmatpush1.bf16.msra.mxu0 %v413
        %430 = vmatprep.subr.bf16.mxu0 0
        %431 = vmatpush1.bf16.msra.mxu0 %v412
        %432 = vmatprep.subr.bf16.mxu0 0
        %433 = vmatpush1.bf16.msra.mxu0 %v411
        %434 = vmatprep.subr.bf16.mxu0 0
        %435 = vmatpush1.bf16.msra.mxu0 %v410
        %436 = vmatprep.subr.bf16.mxu0 0
        %437 = vmatpush1.bf16.msra.mxu0 %v409
        %438 = vmatprep.subr.bf16.mxu0 0
        %439 = vmatpush1.bf16.msra.mxu0 %v408
        %440 = vmatprep.subr.bf16.mxu0 0
        %441 = vmatpush2.bf16.msra.mxu0 0
        %442 = vmatprep.subr.bf16.mxu0 0
        %443 = vmatpush2.bf16.msra.mxu0 0
        %444 = vmatprep.subr.bf16.mxu0 0
        %445 = vmatpush2.bf16.msra.mxu0 0
        %446 = vmatprep.subr.bf16.mxu0 0
        %447 = vmatpush2.bf16.msra.mxu0 0
        %448 = vmatprep.subr.bf16.mxu0 0
        %449 = vmatpush2.bf16.msra.mxu0 0
        %450 = vmatprep.subr.bf16.mxu0 0
        %451 = vmatpush2.bf16.msra.mxu0 0
        %452 = vmatprep.subr.bf16.mxu0 0
        %453 = vmatpush2.bf16.msra.mxu0 0
        %454 = vmatprep.subr.bf16.mxu0 0
        %455 = vmatpush2.bf16.msra.mxu0 0
        %456 = vmatprep.mubr.bf16.mxu0 0
        %457 = vmatmul.mubr.bf16.gmra.mxu0 %v344
        %v458 = vpop.f32.mrf.mxu0
        %v459 = vadd.f32 %v278, %v458
        %v460 = vpop.f32.mrf.mxu0
        %v461 = vpop.f32.mrf.mxu0
        %v462 = vadd.f32 %v278, %v461
        %v463 = vpop.f32.mrf.mxu0
        %464 = vmatprep.mubr.bf16.mxu0 0
        %465 = vmatmul.mubr.bf16.gmra.mxu0 %v345
        %v466 = vpop.f32.mrf.mxu0
        %v467 = vadd.f32 %v278, %v466
        %v468 = vpop.f32.mrf.mxu0
        %v469 = vpop.f32.mrf.mxu0
        %v470 = vadd.f32 %v278, %v469
        %v471 = vpop.f32.mrf.mxu0
        %472 = vmatprep.mubr.bf16.mxu0 0
        %473 = vmatmul.mubr.bf16.gmra.mxu0 %v346
        %v474 = vpop.f32.mrf.mxu0
        %v475 = vadd.f32 %v278, %v474
        %v476 = vpop.f32.mrf.mxu0
        %v477 = vpop.f32.mrf.mxu0
        %v478 = vadd.f32 %v278, %v477
        %v479 = vpop.f32.mrf.mxu0
        %480 = vmatprep.mubr.bf16.mxu0 0
        %481 = vmatmul.mubr.bf16.gmra.mxu0 %v347
        %v482 = vpop.f32.mrf.mxu0
        %v483 = vadd.f32 %v278, %v482
        %v484 = vpop.f32.mrf.mxu0
        %v485 = vpop.f32.mrf.mxu0
        %v486 = vadd.f32 %v278, %v485
        %v487 = vpop.f32.mrf.mxu0
        %488 = vmatprep.mubr.bf16.mxu0 0
        %489 = vmatmul.mubr.bf16.gmra.mxu0 %v348
        %v490 = vpop.f32.mrf.mxu0
        %v491 = vadd.f32 %v278, %v490
        %v492 = vpop.f32.mrf.mxu0
        %v493 = vpop.f32.mrf.mxu0
        %v494 = vadd.f32 %v278, %v493
        %v495 = vpop.f32.mrf.mxu0
        %496 = vmatprep.mubr.bf16.mxu0 0
        %497 = vmatmul.mubr.bf16.gmra.mxu0 %v349
        %v498 = vpop.f32.mrf.mxu0
        %v499 = vadd.f32 %v278, %v498
        %v500 = vpop.f32.mrf.mxu0
        %v501 = vpop.f32.mrf.mxu0
        %v502 = vadd.f32 %v278, %v501
        %v503 = vpop.f32.mrf.mxu0
        %504 = vmatprep.mubr.bf16.mxu0 0
        %505 = vmatmul.mubr.bf16.gmra.mxu0 %v350
        %v506 = vpop.f32.mrf.mxu0
        %v507 = vadd.f32 %v278, %v506
        %v508 = vpop.f32.mrf.mxu0
        %v509 = vpop.f32.mrf.mxu0
        %v510 = vadd.f32 %v278, %v509
        %v511 = vpop.f32.mrf.mxu0
        %512 = vmatprep.mubr.bf16.mxu0 0
        %513 = vmatmul.mubr.bf16.gmra.mxu0 %v351
        %v514 = vpop.f32.mrf.mxu0
        %v515 = vadd.f32 %v278, %v514
        %v516 = vpop.f32.mrf.mxu0
        %v517 = vpop.f32.mrf.mxu0
        %v518 = vadd.f32 %v278, %v517
        %v519 = vpop.f32.mrf.mxu0
        %520 = vmatprep.mubr.bf16.mxu0 0
        %521 = vmatmul.mubr.bf16.gmra.mxu0 %v352
        %v522 = vpop.f32.mrf.mxu0
        %v523 = vadd.f32 %v278, %v522
        %v524 = vpop.f32.mrf.mxu0
        %v525 = vpop.f32.mrf.mxu0
        %v526 = vadd.f32 %v278, %v525
        %v527 = vpop.f32.mrf.mxu0
        %528 = vmatprep.mubr.bf16.mxu0 0
        %529 = vmatmul.mubr.bf16.gmra.mxu0 %v353
        %v530 = vpop.f32.mrf.mxu0
        %v531 = vadd.f32 %v278, %v530
        %v532 = vpop.f32.mrf.mxu0
        %v533 = vpop.f32.mrf.mxu0
        %v534 = vadd.f32 %v278, %v533
        %v535 = vpop.f32.mrf.mxu0
        %536 = vmatprep.mubr.bf16.mxu0 0
        %537 = vmatmul.mubr.bf16.gmra.mxu0 %v354
        %v538 = vpop.f32.mrf.mxu0
        %v539 = vadd.f32 %v278, %v538
        %v540 = vpop.f32.mrf.mxu0
        %v541 = vpop.f32.mrf.mxu0
        %v542 = vadd.f32 %v278, %v541
        %v543 = vpop.f32.mrf.mxu0
        %544 = vmatprep.mubr.bf16.mxu0 0
        %545 = vmatmul.mubr.bf16.gmra.mxu0 %v355
        %v546 = vpop.f32.mrf.mxu0
        %v547 = vadd.f32 %v278, %v546
        %v548 = vpop.f32.mrf.mxu0
        %v549 = vpop.f32.mrf.mxu0
        %v550 = vadd.f32 %v278, %v549
        %v551 = vpop.f32.mrf.mxu0
        %552 = vmatprep.mubr.bf16.mxu0 0
        %553 = vmatmul.mubr.bf16.gmra.mxu0 %v356
        %v554 = vpop.f32.mrf.mxu0
        %v555 = vadd.f32 %v278, %v554
        %v556 = vpop.f32.mrf.mxu0
        %v557 = vpop.f32.mrf.mxu0
        %v558 = vadd.f32 %v278, %v557
        %v559 = vpop.f32.mrf.mxu0
        %560 = vmatprep.mubr.bf16.mxu0 0
        %561 = vmatmul.mubr.bf16.gmra.mxu0 %v357
        %v562 = vpop.f32.mrf.mxu0
        %v563 = vadd.f32 %v278, %v562
        %v564 = vpop.f32.mrf.mxu0
        %v565 = vpop.f32.mrf.mxu0
        %v566 = vadd.f32 %v278, %v565
        %v567 = vpop.f32.mrf.mxu0
        %568 = vmatprep.mubr.bf16.mxu0 0
        %569 = vmatmul.mubr.bf16.gmra.mxu0 %v358
        %v570 = vpop.f32.mrf.mxu0
        %v571 = vadd.f32 %v278, %v570
        %v572 = vpop.f32.mrf.mxu0
        %v573 = vpop.f32.mrf.mxu0
        %v574 = vadd.f32 %v278, %v573
        %v575 = vpop.f32.mrf.mxu0
        %576 = vmatprep.mubr.bf16.mxu0 0
        %577 = vmatmul.mubr.bf16.gmra.mxu0 %v359
        %v578 = vpop.f32.mrf.mxu0
        %v579 = vadd.f32 %v278, %v578
        %v580 = vpop.f32.mrf.mxu0
        %v581 = vpop.f32.mrf.mxu0
        %v582 = vadd.f32 %v278, %v581
        %v583 = vpop.f32.mrf.mxu0
        %584 = vdwg.mxu0
        %585 = vst [vmem:[%s221] sm:$0xff] %v459
        %586 = vst [vmem:[%s221 + $0x8] sm:$0xff] %v462
        %587 = vst [vmem:[%s221 + $0x10] sm:$0xff] %v467
        %588 = vst [vmem:[%s221 + $0x18] sm:$0xff] %v470
        %589 = vst [vmem:[%s221 + $0x20] sm:$0xff] %v475
        %590 = vst [vmem:[%s221 + $0x28] sm:$0xff] %v478
        %591 = vst [vmem:[%s221 + $0x30] sm:$0xff] %v483
        %592 = vst [vmem:[%s221 + $0x38] sm:$0xff] %v486
        %593 = vst [vmem:[%s221 + $0x40] sm:$0xff] %v491
        %594 = vst [vmem:[%s221 + $0x48] sm:$0xff] %v494
        %595 = vst [vmem:[%s221 + $0x50] sm:$0xff] %v499
        %596 = vst [vmem:[%s221 + $0x58] sm:$0xff] %v502
        %597 = vst [vmem:[%s221 + $0x60] sm:$0xff] %v507
        %598 = vst [vmem:[%s221 + $0x68] sm:$0xff] %v510
        %599 = vst [vmem:[%s221 + $0x70] sm:$0xff] %v515
        %600 = vst [vmem:[%s221 + $0x78] sm:$0xff] %v518
        %601 = vst [vmem:[%s221 + $0x80] sm:$0xff] %v523
        %602 = vst [vmem:[%s221 + $0x88] sm:$0xff] %v526
        %603 = vst [vmem:[%s221 + $0x90] sm:$0xff] %v531
        %604 = vst [vmem:[%s221 + $0x98] sm:$0xff] %v534
        %605 = vst [vmem:[%s221 + $0xa0] sm:$0xff] %v539
        %606 = vst [vmem:[%s221 + $0xa8] sm:$0xff] %v542
        %607 = vst [vmem:[%s221 + $0xb0] sm:$0xff] %v547
        %608 = vst [vmem:[%s221 + $0xb8] sm:$0xff] %v550
        %609 = vst [vmem:[%s221 + $0xc0] sm:$0xff] %v555
        %610 = vst [vmem:[%s221 + $0xc8] sm:$0xff] %v558
        %611 = vst [vmem:[%s221 + $0xd0] sm:$0xff] %v563
        %612 = vst [vmem:[%s221 + $0xd8] sm:$0xff] %v566
        %613 = vst [vmem:[%s221 + $0xe0] sm:$0xff] %v571
        %614 = vst [vmem:[%s221 + $0xe8] sm:$0xff] %v574
        %615 = vst [vmem:[%s221 + $0xf0] sm:$0xff] %v579
        %616 = vst [vmem:[%s221 + $0xf8] sm:$0xff] %v582
        %s617 = sand.u32 %s113, 1
        %s618 = scalar_lea.sflag [#allocation4], %s617
        %s619 = sand.u32 %s113, 1
        %s620 = smul.addr %s619, 256
        %s621 = scalar_lea.vmem [#allocation7], %s620
        // Predicated region
        $region41: #{tpu_custom_call.1} parent=31 // pred_check
          %p622 = pneg %p123
        $region42: #{tpu_custom_call.1} parent=31 // pred_check_branch
          %624 = sbr.rel (%p622) target = $region44
        $region43: #{tpu_custom_call.1} parent=31 // pred_region
          %s625 = smul.u32 32, %s26
          %s627 = ssub.s32 4096, 4096
          %628 = vsyncadd %s618, %s627
          %s629 = smul.addr %s25, 32
          %s630 = sadd.s32 %s625, %s629
          %s631 = smul.addr %s630, 128
          %s632 = scalar_lea.hbm %s3, %s631
          %s633 = sshll.u32 %s621, 4
          %s634 = int_to_ptr.vmem [resolvable:$true] %s633
          %639 = dma.vmem_to_hbm [thread:$0]  %s634, 4096, %s632, %s618, 128, 128, 8
        $region44: #{tpu_custom_call.1} parent=31 // pred_fallthru
          _
      $region32: #{tpu_custom_call.1} parent=5 // pred_fallthru
        _
      %p640 = scmp.le.s32.totalorder 2, %s16
      // Predicated region
      $region45: #{tpu_custom_call.1} parent=5 // pred_check
        %p641 = pneg %p640
      $region46: #{tpu_custom_call.1} parent=5 // pred_check_branch
        %643 = sbr.rel (%p641) target = $region48
      $region47: #{tpu_custom_call.1} parent=5 // pred_region
        %s644 = ssub.s32 %s16, 2
        // Predicated region
        $region49: #{tpu_custom_call.1} parent=47 // pred_check
          %p645 = pneg %p129
        $region50: #{tpu_custom_call.1} parent=47 // pred_check_branch
          %647 = sbr.rel (%p645) target = $region52
        $region51: #{tpu_custom_call.1} parent=47 // pred_region
          %s648 = sand.u32 %s114, 1
          %s649 = scalar_lea.sflag [#allocation4], %s648
          %s650 = sand.u32 %s114, 1
          %s651 = smul.addr %s650, 256
          %s652 = scalar_lea.vmem [#allocation7], %s651
          %653 = dma.done %s649, 4096
        $region52: #{tpu_custom_call.1} parent=47 // pred_fallthru
          _
      $region48: #{tpu_custom_call.1} parent=5 // pred_fallthru
        _
    $region6: #{tpu_custom_call.1} parent=1 // loop_footer
      %s20 = sadd.s32 1, %s16
    $region7: #{tpu_custom_call.1} parent=1 // loop_footer_branch
      %15 = sbr.rel target = $region3
    $region8: #{tpu_custom_call.1} parent=1 // loop_exit
      _
    %654 = vsyncpa [#allocation3], 1
    %s655 = scalar_lea.sflag [#allocation3], 1
    %656 = vsyncpa %s655, 1
    %657 = vsyncpa [#allocation6], 1
    %658 = vsyncpa [#allocation4], 1
    %s659 = scalar_lea.sflag [#allocation4], 1
    %660 = vsyncpa %s659, 1

</llo_original>
